<compile_context>
chip_gen: v5e
topology: v5e:2x2
jax: 0.10.0
libtpu: 0.0.40
codegen_flags: <defaults>
</compile_context>

<pallas_src>
import jax
import jax.numpy as jnp
from jax.experimental import pallas as pl
from jax.experimental.pallas import tpu as pltpu

BN_EPS = 1e-5


def _pick_tile_l(L):
    """Largest lane-friendly tile along L (multiple of 128 when possible)."""
    if L % 128 == 0:
        for t in (512, 256, 128):
            if L % t == 0:
                return t
        return 128
    return L  # full extent is always a legal block dim


def _vmem_limit(tile_bytes):
    # generous margin over the explicit double-buffered tile footprint,
    # clamped so the same code is safe on v5e (16 MiB default) and v7x (64 MiB
    # physical) without starving the compiler of buffering room.
    return int(min(max(4 * tile_bytes, 16 * 1024 * 1024), 48 * 1024 * 1024))


# --------------------------- pass 1: batch statistics ------------------------

def _stats_kernel(x_ref, w_ref, sum_ref, sq_ref):
    # x_ref:   (1, C, tile_L) bf16     w_ref: (O, C) bf16
    # sum_ref: (O, 1) f32  running per-channel sum over all (n, l) positions
    # sq_ref:  (O, 1) f32  running per-channel sum of squares
    first = jnp.logical_and(pl.program_id(0) == 0, pl.program_id(1) == 0)

    @pl.when(first)
    def _():
        sum_ref[...] = jnp.zeros_like(sum_ref)
        sq_ref[...] = jnp.zeros_like(sq_ref)

    y = jnp.dot(w_ref[...], x_ref[0], preferred_element_type=jnp.float32)  # (O, tile_L)
    sum_ref[...] += jnp.sum(y, axis=1, keepdims=True)
    sq_ref[...] += jnp.sum(y * y, axis=1, keepdims=True)


# ----------------------- pass 2: normalize + ReLU6 (apply) -------------------

def _apply_kernel(x_ref, w_ref, scale_ref, shift_ref, o_ref):
    # Folded BN: z = y * scale + shift  (single mul+add on the big tile).
    y = jnp.dot(w_ref[...], x_ref[0], preferred_element_type=jnp.float32)  # (O, tile_L)
    z = y * scale_ref[...] + shift_ref[...]
    o_ref[0] = jnp.clip(z, 0.0, 6.0).astype(o_ref.dtype)


@jax.jit
def conv1_1_block(x, weight, gamma, beta):
    """x: (N, in_ch, L) f32, weight: (block_ch, in_ch, 1), gamma/beta: (block_ch,)."""
    N, C, L = x.shape
    O = weight.shape[0]
    tile_l = _pick_tile_l(L)
    n_lt = L // tile_l
    M = N * L

    x_bf = x.astype(jnp.bfloat16)                 # NCL, no transpose needed
    w_bf = weight[:, :, 0].astype(jnp.bfloat16)   # (O, C)

    x_spec = pl.BlockSpec((1, C, tile_l), lambda n, l: (n, 0, l))
    w_spec = pl.BlockSpec((O, C), lambda n, l: (0, 0))
    vec_spec = pl.BlockSpec((O, 1), lambda n, l: (0, 0))

    bytes_x_tile = C * tile_l * 2
    bytes_w = O * C * 2
    bytes_y_tile = O * tile_l * 4
    bytes_o_tile = O * tile_l * 4

    # ---- pass 1: per-channel sum / sumsq over the whole batch ---------------
    s, sq = pl.pallas_call(
        _stats_kernel,
        out_shape=(jax.ShapeDtypeStruct((O, 1), jnp.float32),
                   jax.ShapeDtypeStruct((O, 1), jnp.float32)),
        grid=(N, n_lt),
        in_specs=[x_spec, w_spec],
        out_specs=(vec_spec, vec_spec),
        compiler_params=pltpu.CompilerParams(
            dimension_semantics=("arbitrary", "arbitrary"),
            vmem_limit_bytes=_vmem_limit(
                2 * bytes_x_tile + 2 * bytes_w + bytes_y_tile + 8 * O * 4),
        ),
        cost_estimate=pl.CostEstimate(
            flops=2 * M * C * O + 4 * M * O,
            transcendentals=0,
            bytes_accessed=N * C * L * 2 + O * C * 2 + 2 * O * 4,
        ),
    )(x_bf, w_bf)

    # ---- tiny glue: fold BN (batch mean, biased var) into one affine --------
    mean = s / M                                              # (O, 1)
    var = jnp.maximum(sq / M - mean * mean, 0.0)              # (O, 1)
    scale = gamma.reshape(O, 1).astype(jnp.float32) * jax.lax.rsqrt(var + BN_EPS)
    shift = beta.reshape(O, 1).astype(jnp.float32) - mean * scale

    # ---- pass 2: y = W@x, z = y*scale+shift, ReLU6, lane-dense (N,O,L) out --
    out = pl.pallas_call(
        _apply_kernel,
        out_shape=jax.ShapeDtypeStruct((N, O, L), x.dtype),
        grid=(N, n_lt),
        in_specs=[x_spec, w_spec, vec_spec, vec_spec],
        out_specs=pl.BlockSpec((1, O, tile_l), lambda n, l: (n, 0, l)),
        compiler_params=pltpu.CompilerParams(
            dimension_semantics=("parallel", "parallel"),
            vmem_limit_bytes=_vmem_limit(
                2 * bytes_x_tile + 2 * bytes_w + bytes_y_tile
                + 2 * bytes_o_tile + 8 * O * 4),
        ),
        cost_estimate=pl.CostEstimate(
            flops=2 * M * C * O + 2 * M * O,
            transcendentals=0,
            bytes_accessed=N * C * L * 2 + O * C * 2 + 2 * O * 4 + N * O * L * 4,
        ),
    )(x_bf, w_bf, scale, shift)

    return out


def _reference(x, weight, gamma, beta):
    # Pure-JAX reference with the same bf16 matmul operands, f32 math.
    xb = x.astype(jnp.bfloat16).astype(jnp.float32)
    wb = weight[:, :, 0].astype(jnp.bfloat16).astype(jnp.float32)
    y = jnp.einsum('oc,ncl->nol', wb, xb)
    mean = jnp.mean(y, axis=(0, 2), keepdims=True)
    var = jnp.mean((y - mean) ** 2, axis=(0, 2), keepdims=True)
    z = (y - mean) / jnp.sqrt(var + BN_EPS)
    z = z * gamma.reshape(1, -1, 1) + beta.reshape(1, -1, 1)
    return jnp.clip(z, 0.0, 6.0)


if __name__ == "__main__":
    # Small shapes consistent with the module: N=2, in_ch=4, L=16, block_ch=8.
    N, in_ch, L, block_ch = 2, 4, 16, 8

    key = jax.random.PRNGKey(0)
    kx, kw = jax.random.split(key)

    x = jax.random.normal(kx, (N, in_ch, L), dtype=jnp.float32)
    weight = jax.random.normal(kw, (block_ch, in_ch, 1), dtype=jnp.float32) * (
        1.0 / jnp.sqrt(in_ch)
    )
    gamma = jnp.ones((block_ch,), dtype=jnp.float32)   # BatchNorm1d default init
    beta = jnp.zeros((block_ch,), dtype=jnp.float32)

    out = conv1_1_block(x, weight, gamma, beta)
    jax.block_until_ready(out)

    ref = _reference(x, weight, gamma, beta)
    assert out.shape == (N, block_ch, L)
    assert jnp.allclose(out, ref, atol=2e-3, rtol=2e-3), float(
        jnp.max(jnp.abs(out - ref)))

    print("KERNEL_OK")
</pallas_src>

<mosaic_0001>
module attributes {stable_mosaic.version = 11 : i64} {
  func.func @_stats_kernel(%arg0: i32, %arg1: i32, %arg2: memref<1x4x16xbf16, #tpu.memory_space<vmem>>, %arg3: memref<8x4xbf16, #tpu.memory_space<vmem>>, %arg4: memref<8x1xf32, #tpu.memory_space<vmem>>, %arg5: memref<8x1xf32, #tpu.memory_space<vmem>>) attributes {dimension_semantics = [#tpu.dimension_semantics<arbitrary>, #tpu.dimension_semantics<arbitrary>], iteration_bounds = array<i64: 2, 1>, scalar_prefetch = 0 : i64, scratch_operands = 0 : i64, tpu.core_type = #tpu.core_type<tc>, window_params = [{transform_indices = @transform_0, window_bounds = array<i64: 1, 4, 16>}, {pipeline_mode = #tpu.pipeline_mode<synchronous>, transform_indices = @transform_1, window_bounds = array<i64: 8, 4>}, {pipeline_mode = #tpu.pipeline_mode<synchronous>, transform_indices = @transform_2, window_bounds = array<i64: 8, 1>}, {pipeline_mode = #tpu.pipeline_mode<synchronous>, transform_indices = @transform_3, window_bounds = array<i64: 8, 1>}]} {
    %c0_i32 = arith.constant 0 : i32
    %0 = arith.cmpi eq, %arg0, %c0_i32 : i32
    %c0_i32_0 = arith.constant 0 : i32
    %1 = arith.cmpi eq, %arg1, %c0_i32_0 : i32
    %2 = arith.andi %0, %1 : i1
    %3 = arith.extui %2 : i1 to i32
    %c0_i32_1 = arith.constant 0 : i32
    %4 = arith.cmpi ne, %3, %c0_i32_1 : i32
    scf.if %4 {
      %cst_16 = arith.constant 0.000000e+00 : f32
      %20 = vector.broadcast %cst_16 : f32 to vector<8x1xf32>
      %c0_17 = arith.constant 0 : index
      %c0_18 = arith.constant 0 : index
      %21 = vector.load %arg4[%c0_17, %c0_18] : memref<8x1xf32, #tpu.memory_space<vmem>>, vector<8x1xf32>
      tpu.vector_store %arg4[%c0_17, %c0_18], %20 {strides = array<i32>} : memref<8x1xf32, #tpu.memory_space<vmem>>, vector<8x1xf32>,
      %cst_19 = arith.constant 0.000000e+00 : f32
      %22 = vector.broadcast %cst_19 : f32 to vector<8x1xf32>
      %c0_20 = arith.constant 0 : index
      %c0_21 = arith.constant 0 : index
      %23 = vector.load %arg5[%c0_20, %c0_21] : memref<8x1xf32, #tpu.memory_space<vmem>>, vector<8x1xf32>
      tpu.vector_store %arg5[%c0_20, %c0_21], %22 {strides = array<i32>} : memref<8x1xf32, #tpu.memory_space<vmem>>, vector<8x1xf32>,
    } else {
    }
    %c0 = arith.constant 0 : index
    %c0_2 = arith.constant 0 : index
    %5 = vector.load %arg3[%c0, %c0_2] : memref<8x4xbf16, #tpu.memory_space<vmem>>, vector<8x4xbf16>
    %c0_3 = arith.constant 0 : index
    %c0_4 = arith.constant 0 : index
    %c0_5 = arith.constant 0 : index
    %6 = vector.load %arg2[%c0_3, %c0_4, %c0_5] : memref<1x4x16xbf16, #tpu.memory_space<vmem>>, vector<1x4x16xbf16>
    %7 = vector.shape_cast %6 : vector<1x4x16xbf16> to vector<4x16xbf16>
    %cst = arith.constant dense<0.000000e+00> : vector<8x16xf32>
    %8 = tpu.matmul %5, %7, %cst {dimension_numbers = #tpu.dot_dimension_numbers<[1], [0], [0], [1], [0, 0, 1, 1], [], []>} : vector<8x4xbf16>, vector<4x16xbf16>, vector<8x16xf32> -> vector<8x16xf32>
    %c0_6 = arith.constant 0 : index
    %c0_7 = arith.constant 0 : index
    %9 = vector.load %arg4[%c0_6, %c0_7] : memref<8x1xf32, #tpu.memory_space<vmem>>, vector<8x1xf32>
    %cst_8 = arith.constant dense<0.000000e+00> : vector<8xf32>
    %10 = vector.multi_reduction <add>, %8, %cst_8 [1] : vector<8x16xf32> to vector<8xf32>
    %11 = vector.shape_cast %10 : vector<8xf32> to vector<8x1xf32>
    %12 = arith.addf %9, %11 : vector<8x1xf32>
    %c0_9 = arith.constant 0 : index
    %c0_10 = arith.constant 0 : index
    %13 = vector.load %arg4[%c0_9, %c0_10] : memref<8x1xf32, #tpu.memory_space<vmem>>, vector<8x1xf32>
    tpu.vector_store %arg4[%c0_9, %c0_10], %12 {strides = array<i32>} : memref<8x1xf32, #tpu.memory_space<vmem>>, vector<8x1xf32>,
    %c0_11 = arith.constant 0 : index
    %c0_12 = arith.constant 0 : index
    %14 = vector.load %arg5[%c0_11, %c0_12] : memref<8x1xf32, #tpu.memory_space<vmem>>, vector<8x1xf32>
    %15 = arith.mulf %8, %8 : vector<8x16xf32>
    %cst_13 = arith.constant dense<0.000000e+00> : vector<8xf32>
    %16 = vector.multi_reduction <add>, %15, %cst_13 [1] : vector<8x16xf32> to vector<8xf32>
    %17 = vector.shape_cast %16 : vector<8xf32> to vector<8x1xf32>
    %18 = arith.addf %14, %17 : vector<8x1xf32>
    %c0_14 = arith.constant 0 : index
    %c0_15 = arith.constant 0 : index
    %19 = vector.load %arg5[%c0_14, %c0_15] : memref<8x1xf32, #tpu.memory_space<vmem>>, vector<8x1xf32>
    tpu.vector_store %arg5[%c0_14, %c0_15], %18 {strides = array<i32>} : memref<8x1xf32, #tpu.memory_space<vmem>>, vector<8x1xf32>,
    return
  }
  func.func @transform_0(%arg0: i32, %arg1: i32) -> (i32, i32, i32) {
    %c0_i32 = arith.constant 0 : i32
    %c0_i32_0 = arith.constant 0 : i32
    return %arg0, %c0_i32, %arg1 : i32, i32, i32
  }
  func.func @transform_1(%arg0: i32, %arg1: i32) -> (i32, i32) {
    %c0_i32 = arith.constant 0 : i32
    %c0_i32_0 = arith.constant 0 : i32
    %c0_i32_1 = arith.constant 0 : i32
    return %c0_i32, %c0_i32_0 : i32, i32
  }
  func.func @transform_2(%arg0: i32, %arg1: i32) -> (i32, i32) {
    %c0_i32 = arith.constant 0 : i32
    %c0_i32_0 = arith.constant 0 : i32
    %c0_i32_1 = arith.constant 0 : i32
    return %c0_i32, %c0_i32_0 : i32, i32
  }
  func.func @transform_3(%arg0: i32, %arg1: i32) -> (i32, i32) {
    %c0_i32 = arith.constant 0 : i32
    %c0_i32_0 = arith.constant 0 : i32
    %c0_i32_1 = arith.constant 0 : i32
    return %c0_i32, %c0_i32_0 : i32, i32
  }
}

module attributes {stable_mosaic.version = 11 : i64} {
  func.func @_apply_kernel(%arg0: i32, %arg1: i32, %arg2: memref<1x4x16xbf16, #tpu.memory_space<vmem>>, %arg3: memref<8x4xbf16, #tpu.memory_space<vmem>>, %arg4: memref<8x1xf32, #tpu.memory_space<vmem>>, %arg5: memref<8x1xf32, #tpu.memory_space<vmem>>, %arg6: memref<1x8x16xf32, #tpu.memory_space<vmem>>) attributes {dimension_semantics = [#tpu.dimension_semantics<parallel>, #tpu.dimension_semantics<parallel>], iteration_bounds = array<i64: 2, 1>, scalar_prefetch = 0 : i64, scratch_operands = 0 : i64, tpu.core_type = #tpu.core_type<tc>, window_params = [{transform_indices = @transform_0, window_bounds = array<i64: 1, 4, 16>}, {pipeline_mode = #tpu.pipeline_mode<synchronous>, transform_indices = @transform_1, window_bounds = array<i64: 8, 4>}, {pipeline_mode = #tpu.pipeline_mode<synchronous>, transform_indices = @transform_2, window_bounds = array<i64: 8, 1>}, {pipeline_mode = #tpu.pipeline_mode<synchronous>, transform_indices = @transform_3, window_bounds = array<i64: 8, 1>}, {transform_indices = @transform_4, window_bounds = array<i64: 1, 8, 16>}]} {
    %c0 = arith.constant 0 : index
    %c0_0 = arith.constant 0 : index
    %0 = vector.load %arg3[%c0, %c0_0] : memref<8x4xbf16, #tpu.memory_space<vmem>>, vector<8x4xbf16>
    %c0_1 = arith.constant 0 : index
    %c0_2 = arith.constant 0 : index
    %c0_3 = arith.constant 0 : index
    %1 = vector.load %arg2[%c0_1, %c0_2, %c0_3] : memref<1x4x16xbf16, #tpu.memory_space<vmem>>, vector<1x4x16xbf16>
    %2 = vector.shape_cast %1 : vector<1x4x16xbf16> to vector<4x16xbf16>
    %cst = arith.constant dense<0.000000e+00> : vector<8x16xf32>
    %3 = tpu.matmul %0, %2, %cst {dimension_numbers = #tpu.dot_dimension_numbers<[1], [0], [0], [1], [0, 0, 1, 1], [], []>} : vector<8x4xbf16>, vector<4x16xbf16>, vector<8x16xf32> -> vector<8x16xf32>
    %c0_4 = arith.constant 0 : index
    %c0_5 = arith.constant 0 : index
    %4 = vector.load %arg4[%c0_4, %c0_5] : memref<8x1xf32, #tpu.memory_space<vmem>>, vector<8x1xf32>
    %5 = vector.broadcast %4 : vector<8x1xf32> to vector<8x16xf32>
    %6 = arith.mulf %3, %5 : vector<8x16xf32>
    %c0_6 = arith.constant 0 : index
    %c0_7 = arith.constant 0 : index
    %7 = vector.load %arg5[%c0_6, %c0_7] : memref<8x1xf32, #tpu.memory_space<vmem>>, vector<8x1xf32>
    %8 = vector.broadcast %7 : vector<8x1xf32> to vector<8x16xf32>
    %9 = arith.addf %6, %8 : vector<8x16xf32>
    %cst_8 = arith.constant 0.000000e+00 : f32
    %cst_9 = arith.constant 6.000000e+00 : f32
    %10 = vector.broadcast %cst_8 : f32 to vector<8x16xf32>
    %11 = arith.maximumf %10, %9 : vector<8x16xf32>
    %12 = vector.broadcast %cst_9 : f32 to vector<8x16xf32>
    %13 = arith.minimumf %12, %11 : vector<8x16xf32>
    %c0_10 = arith.constant 0 : index
    %c0_11 = arith.constant 0 : index
    %c0_12 = arith.constant 0 : index
    %14 = vector.load %arg6[%c0_10, %c0_11, %c0_12] : memref<1x8x16xf32, #tpu.memory_space<vmem>>, vector<1x8x16xf32>
    %15 = vector.shape_cast %14 : vector<1x8x16xf32> to vector<8x16xf32>
    %16 = vector.shape_cast %13 : vector<8x16xf32> to vector<1x8x16xf32>
    tpu.vector_store %arg6[%c0_10, %c0_11, %c0_12], %16 {strides = array<i32>} : memref<1x8x16xf32, #tpu.memory_space<vmem>>, vector<1x8x16xf32>,
    return
  }
  func.func @transform_0(%arg0: i32, %arg1: i32) -> (i32, i32, i32) {
    %c0_i32 = arith.constant 0 : i32
    %c0_i32_0 = arith.constant 0 : i32
    return %arg0, %c0_i32, %arg1 : i32, i32, i32
  }
  func.func @transform_1(%arg0: i32, %arg1: i32) -> (i32, i32) {
    %c0_i32 = arith.constant 0 : i32
    %c0_i32_0 = arith.constant 0 : i32
    %c0_i32_1 = arith.constant 0 : i32
    return %c0_i32, %c0_i32_0 : i32, i32
  }
  func.func @transform_2(%arg0: i32, %arg1: i32) -> (i32, i32) {
    %c0_i32 = arith.constant 0 : i32
    %c0_i32_0 = arith.constant 0 : i32
    %c0_i32_1 = arith.constant 0 : i32
    return %c0_i32, %c0_i32_0 : i32, i32
  }
  func.func @transform_3(%arg0: i32, %arg1: i32) -> (i32, i32) {
    %c0_i32 = arith.constant 0 : i32
    %c0_i32_0 = arith.constant 0 : i32
    %c0_i32_1 = arith.constant 0 : i32
    return %c0_i32, %c0_i32_0 : i32, i32
  }
  func.func @transform_4(%arg0: i32, %arg1: i32) -> (i32, i32, i32) {
    %c0_i32 = arith.constant 0 : i32
    %c0_i32_0 = arith.constant 0 : i32
    return %arg0, %c0_i32, %arg1 : i32, i32, i32
  }
}

</mosaic_0001>

<llo_original>
// kernel: conv1_1_block.2
$region0: #{conv1_1_block.2}
  #allocation0 [shape = 'u32[]', space=smem, size = 0x4, offset = 0x4, fixed_abs, tag = 'smem constant byte address 0x4 - core index']
  #allocation1 [shape = 'u32[72,128]{1,0:T(1,128)}', space=vmem, size = 0x9000, scoped, tag = 'internal scratch']
  %s0 = inlined_call_operand.vmem [shape: bf16[2,4,16], index: 0, kind: input, shape index: {}]
  %s1 = inlined_call_operand.vmem [shape: bf16[8,4], index: 1, kind: input, shape index: {}]
  %s2 = inlined_call_operand.vmem [shape: f32[8,1], index: 2, kind: output, shape index: {0}]
  %s3 = inlined_call_operand.vmem [shape: f32[8,1], index: 3, kind: output, shape index: {1}]
  %4 = xla_tuple %s2, %s3
  %s5 = sld [smem:[#allocation0]]
  $region53: #{conv1_1_block.2} parent=0
    _
  %s7 = ssub.s32 1, %s5
  %s8 = scalar_select 0, %s7, %s5
  loop: start=0, step=1, limit=4
  $region2: #{conv1_1_block.2} parent=0 // loop_pre_header
    _
  $region3: #{conv1_1_block.2} parent=0 // loop_header
    %s10 = sphi 0, %s14
    %p11 = scmp.ge.s32.totalorder %s10, 4
    %s17 = sphi 0, %s29
    %s18 = sphi 0, %s25
    %s19 = sphi 0, %s17
    %s20 = sphi 0, %s18
    %s21 = sphi 0, %s19
    %s22 = sphi 0, %s20
    %s34 = sphi 0, %s36
    %s37 = sphi 0, %s34
    %s38 = sphi 0, %s37
    %s54 = sphi 0, %s38
    %s58 = sphi 0, %s58
    %s60 = sphi 0, %s58
    %s61 = sphi 0, %s60
    %s75 = sphi 0, %s61
    %s79 = sphi 0, %s79
    %s81 = sphi 0, %s79
    %s82 = sphi 0, %s81
    %s96 = sphi 0, %s82
    %s100 = sphi 0, %s100
    %s102 = sphi 0, %s100
    %s103 = sphi 0, %s102
    %s117 = sphi 0, %s103
  $region4: #{conv1_1_block.2} parent=0 // loop_header_branch
    %13 = sbr.rel (%p11) target = $region8
  $region5: #{conv1_1_block.2} parent=0 // loop_body
    %s15 = ssub.s32 %s10, 1
    %s16 = ssub.s32 %s10, 2
    %s23 = sadd.s32 1, %s18
    %p24 = scmp.ge.s32.totalorder %s23, 1
    %s25 = scalar_select %p24, 0, %s23
    %s26 = sadd.s32 1, %s17
    %s27 = scalar_select %p24, %s26, %s17
    %p28 = scmp.ge.s32.totalorder %s27, 2
    %s29 = scalar_select %p28, 0, %s27
    %s30 = ssub.s32 %s17, %s29
    %s31 = ssub.s32 %s18, %s25
    %s32 = sor.u32 %s30, %s31
    %p33 = scmp.eq.s32.totalorder %s32, 0
    %s35 = sadd.s32 %s34, 1
    %s36 = scalar_select %p33, %s34, %s35
    %p39 = pneg %p33
    %p40 = scmp.eq.s32.totalorder %s10, 1
    %p41 = por %p39, %p40
    %p42 = scmp.ne.s32.totalorder %s34, %s37
    %p43 = scmp.eq.s32.totalorder %s10, 0
    %p44 = por %p42, %p43
    %p45 = scmp.ne.s32.totalorder %s34, %s37
    %p46 = scmp.eq.s32.totalorder %s15, 1
    %p47 = por %p45, %p46
    %p48 = scmp.ne.s32.totalorder %s37, %s38
    %p49 = scmp.eq.s32.totalorder %s15, 0
    %p50 = por %p48, %p49
    %p51 = scmp.ne.s32.totalorder %s37, %s38
    %p52 = scmp.eq.s32.totalorder %s16, 1
    %p53 = por %p51, %p52
    %p55 = scmp.ne.s32.totalorder %s38, %s54
    %p56 = scmp.eq.s32.totalorder %s16, 0
    %p57 = por %p55, %p56
    %s59 = sadd.s32 %s58, 1
    %p62 = scmp.eq.s32.totalorder %s10, 1
    %p63 = scmp.ne.s32.totalorder %s58, %s60
    %p64 = scmp.eq.s32.totalorder %s10, 0
    %p65 = por %p63, %p64
    %p66 = scmp.ne.s32.totalorder %s58, %s60
    %p67 = scmp.eq.s32.totalorder %s15, 1
    %p68 = por %p66, %p67
    %p69 = scmp.ne.s32.totalorder %s60, %s61
    %p70 = scmp.eq.s32.totalorder %s15, 0
    %p71 = por %p69, %p70
    %p72 = scmp.ne.s32.totalorder %s60, %s61
    %p73 = scmp.eq.s32.totalorder %s16, 1
    %p74 = por %p72, %p73
    %p76 = scmp.ne.s32.totalorder %s61, %s75
    %p77 = scmp.eq.s32.totalorder %s16, 0
    %p78 = por %p76, %p77
    %s80 = sadd.s32 %s79, 1
    %p83 = scmp.eq.s32.totalorder %s10, 1
    %p84 = scmp.ne.s32.totalorder %s79, %s81
    %p85 = scmp.eq.s32.totalorder %s10, 0
    %p86 = por %p84, %p85
    %p87 = scmp.ne.s32.totalorder %s79, %s81
    %p88 = scmp.eq.s32.totalorder %s15, 1
    %p89 = por %p87, %p88
    %p90 = scmp.ne.s32.totalorder %s81, %s82
    %p91 = scmp.eq.s32.totalorder %s15, 0
    %p92 = por %p90, %p91
    %p93 = scmp.ne.s32.totalorder %s81, %s82
    %p94 = scmp.eq.s32.totalorder %s16, 1
    %p95 = por %p93, %p94
    %p97 = scmp.ne.s32.totalorder %s82, %s96
    %p98 = scmp.eq.s32.totalorder %s16, 0
    %p99 = por %p97, %p98
    %s101 = sadd.s32 %s100, 1
    %p104 = scmp.eq.s32.totalorder %s10, 1
    %p105 = scmp.ne.s32.totalorder %s100, %s102
    %p106 = scmp.eq.s32.totalorder %s10, 0
    %p107 = por %p105, %p106
    %p108 = scmp.ne.s32.totalorder %s100, %s102
    %p109 = scmp.eq.s32.totalorder %s15, 1
    %p110 = por %p108, %p109
    %p111 = scmp.ne.s32.totalorder %s102, %s103
    %p112 = scmp.eq.s32.totalorder %s15, 0
    %p113 = por %p111, %p112
    %p114 = scmp.ne.s32.totalorder %s102, %s103
    %p115 = scmp.eq.s32.totalorder %s16, 1
    %p116 = por %p114, %p115
    %p118 = scmp.ne.s32.totalorder %s103, %s117
    %p119 = scmp.eq.s32.totalorder %s16, 0
    %p120 = por %p118, %p119
    %p121 = scmp.le.s32.totalorder 1, %s10
    %p122 = scmp.lt.s32.totalorder %s10, 3
    %p123 = pnand %p121, %p122
    %p124 = pneg %p123
    // Predicated region
    $region9: #{conv1_1_block.2} parent=5 // pred_check
      _
    $region10: #{conv1_1_block.2} parent=5 // pred_check_branch
      %126 = sbr.rel (%p123) target = $region12
    $region11: #{conv1_1_block.2} parent=5 // pred_region
      %s127 = ssub.s32 %s10, 1
      // Predicated region
      $region13: #{conv1_1_block.2} parent=11 // pred_check
        %p128 = pneg %p71
      $region14: #{conv1_1_block.2} parent=11 // pred_check_branch
        %130 = sbr.rel (%p128) target = $region16
      $region15: #{conv1_1_block.2} parent=11 // pred_region
        _
      $region16: #{conv1_1_block.2} parent=11 // pred_fallthru
        _
    $region12: #{conv1_1_block.2} parent=5 // pred_fallthru
      _
    %p131 = scmp.lt.s32.totalorder %s10, 2
    // Predicated region
    $region17: #{conv1_1_block.2} parent=5 // pred_check
      %p132 = pneg %p131
    $region18: #{conv1_1_block.2} parent=5 // pred_check_branch
      %134 = sbr.rel (%p132) target = $region20
    $region19: #{conv1_1_block.2} parent=5 // pred_region
      // Predicated region
      $region21: #{conv1_1_block.2} parent=19 // pred_check
        %p135 = pneg %p44
      $region22: #{conv1_1_block.2} parent=19 // pred_check_branch
        %137 = sbr.rel (%p135) target = $region24
      $region23: #{conv1_1_block.2} parent=19 // pred_region
        %p138 = scmp.lt.s32.totalorder %s17, 1
        %s139 = scalar_select %p138, %s17, 1
        %p140 = scmp.lt.s32.totalorder %s18, 0
        %s141 = scalar_select %p140, %s18, 0
        %s142 = sadd.s32 %s141, %s139
        %s143 = smul.addr %s142, 2
        %s144 = scalar_lea.vmem %s0, %s143
      $region24: #{conv1_1_block.2} parent=19 // pred_fallthru
        _
    $region20: #{conv1_1_block.2} parent=5 // pred_fallthru
      _
    %p145 = scmp.le.s32.totalorder 1, %s10
    %p146 = scmp.lt.s32.totalorder %s10, 3
    %p147 = pnand %p145, %p146
    %p148 = pneg %p147
    // Predicated region
    $region25: #{conv1_1_block.2} parent=5 // pred_check
      _
    $region26: #{conv1_1_block.2} parent=5 // pred_check_branch
      %150 = sbr.rel (%p147) target = $region28
    $region27: #{conv1_1_block.2} parent=5 // pred_region
      %s151 = ssub.s32 %s10, 1
      %p152 = scmp.lt.s32.totalorder %s19, 1
      %s153 = scalar_select %p152, %s19, 1
      %p154 = scmp.lt.s32.totalorder %s20, 0
      %s155 = scalar_select %p154, %s20, 0
      %s156 = sadd.s32 %s155, %s153
      %s157 = smul.addr %s156, 2
      %s158 = scalar_lea.vmem %s0, %s157
      %p159 = pneg %p50
      %p160 = pneg %p47
      %p161 = pneg %p71
      %p162 = pneg %p68
      %p163 = pneg %p92
      %p164 = pneg %p89
      %p165 = pneg %p113
      %p166 = pneg %p110
      %p167 = scmp.lt.s32.totalorder %s19, 1
      %s168 = scalar_select %p167, %s19, 1
      %p169 = scmp.lt.s32.totalorder %s20, 0
      %s170 = scalar_select %p169, %s20, 0
      %s171 = sadd.s32 %s170, %s168
      %s172 = smul.addr %s171, 2
      %s173 = scalar_lea.vmem %s0, %s172
      %p175 = scmp.eq.s32.totalorder %s19, 0
      %p176 = scmp.eq.s32.totalorder %s20, 0
      %p177 = pnand %p175, %p176
      %p178 = pneg %p177
      // Predicated region
      $region29: #{conv1_1_block.2} parent=27 // pred_check
        _
      $region30: #{conv1_1_block.2} parent=27 // pred_check_branch
        %180 = sbr.rel (%p177) target = $region32
      $region31: #{conv1_1_block.2} parent=27 // pred_region
        %vm181 = vcmask 7168
        %182 = vst.msk [vmem:[%s2] sm:$0xff] %vm181, 0.0
        %183 = vst.msk [vmem:[%s3] sm:$0xff] %vm181, 0.0
      $region32: #{conv1_1_block.2} parent=27 // pred_fallthru
        _
      %v184 = vld [vmem:[%s1] sm:$0xf]
      %v185 = vld [vmem:[%s173] sm:$0x3]
      %vm186 = vcmask 31744
      %v188 = vsel %vm186, %v184, 0
      %vm190 = vcmask 1041408
      %v192 = vsel %vm190, %v185, 0
      %194 = vmatpush.bf16.msra.mxu0 0
      %195 = vmatpush.bf16.msra.mxu0 0
      %196 = vmatpush.bf16.msra.mxu0 0
      %197 = vmatpush.bf16.msra.mxu0 0
      %198 = vmatpush.bf16.msra.mxu0 0
      %199 = vmatpush.bf16.msra.mxu0 0
      %200 = vmatpush.bf16.msra.mxu0 0
      %201 = vmatpush.bf16.msra.mxu0 %v192
      %202 = vmatmul.bf16.gmra.mxu0 %v188
      %v203 = vpop.f32.mrf.mxu0
      %v204 = vadd.f32 0.0, %v203
      %v205 = vpop.f32.mrf.mxu0
      %206 = vdwg.mxu0
      %v207 = vld [vmem:[%s2] sm:$0xff]
      %vm208 = vcmask 130048
      %v209 = vsel %vm208, %v204, 0.0
      %210 = vadd.xlane.f32.xlu0 %v209
      %v211 = vpop.xlane.xlu0 %210
      %v212 = vadd.f32 %v207, %v211
      %vm213 = vcmask 7168
      %214 = vst.msk [vmem:[%s2] sm:$0xff] %vm213, %v212
      %v215 = vld [vmem:[%s3] sm:$0xff]
      %v216 = vmul.f32 %v204, %v204
      %v217 = vsel %vm208, %v216, 0.0
      %218 = vadd.xlane.f32.xlu0 %v217
      %v219 = vpop.xlane.xlu0 %218
      %v220 = vadd.f32 %v215, %v219
      %221 = vst.msk [vmem:[%s3] sm:$0xff] %vm213, %v220
      // Predicated region
      $region33: #{conv1_1_block.2} parent=27 // pred_check
        %p222 = pneg %p89
      $region34: #{conv1_1_block.2} parent=27 // pred_check_branch
        %224 = sbr.rel (%p222) target = $region36
      $region35: #{conv1_1_block.2} parent=27 // pred_region
        _
      $region36: #{conv1_1_block.2} parent=27 // pred_fallthru
        _
      // Predicated region
      $region37: #{conv1_1_block.2} parent=27 // pred_check
        %p225 = pneg %p110
      $region38: #{conv1_1_block.2} parent=27 // pred_check_branch
        %227 = sbr.rel (%p225) target = $region40
      $region39: #{conv1_1_block.2} parent=27 // pred_region
        _
      $region40: #{conv1_1_block.2} parent=27 // pred_fallthru
        _
      // Predicated region
      $region41: #{conv1_1_block.2} parent=27 // pred_check
        %p228 = pneg %p89
      $region42: #{conv1_1_block.2} parent=27 // pred_check_branch
        %230 = sbr.rel (%p228) target = $region44
      $region43: #{conv1_1_block.2} parent=27 // pred_region
        _
      $region44: #{conv1_1_block.2} parent=27 // pred_fallthru
        _
      // Predicated region
      $region45: #{conv1_1_block.2} parent=27 // pred_check
        %p231 = pneg %p110
      $region46: #{conv1_1_block.2} parent=27 // pred_check_branch
        %233 = sbr.rel (%p231) target = $region48
      $region47: #{conv1_1_block.2} parent=27 // pred_region
        _
      $region48: #{conv1_1_block.2} parent=27 // pred_fallthru
        _
    $region28: #{conv1_1_block.2} parent=5 // pred_fallthru
      _
    %p234 = scmp.le.s32.totalorder 2, %s10
    // Predicated region
    $region49: #{conv1_1_block.2} parent=5 // pred_check
      %p235 = pneg %p234
    $region50: #{conv1_1_block.2} parent=5 // pred_check_branch
      %237 = sbr.rel (%p235) target = $region52
    $region51: #{conv1_1_block.2} parent=5 // pred_region
      %s238 = ssub.s32 %s10, 2
    $region52: #{conv1_1_block.2} parent=5 // pred_fallthru
      _
  $region6: #{conv1_1_block.2} parent=0 // loop_footer
    %s14 = sadd.s32 1, %s10
  $region7: #{conv1_1_block.2} parent=0 // loop_footer_branch
    %9 = sbr.rel target = $region3
  $region8: #{conv1_1_block.2} parent=0 // loop_exit
    _

// kernel: conv1_1_block.3
$region0: #{conv1_1_block.3}
  #allocation0 [shape = 'u32[]', space=smem, size = 0x4, offset = 0x4, fixed_abs, tag = 'smem constant byte address 0x4 - core index']
  #allocation1 [shape = 'u32[72,128]{1,0:T(1,128)}', space=vmem, size = 0x9000, scoped, tag = 'internal scratch']
  %s0 = inlined_call_operand.vmem [shape: bf16[2,4,16], index: 0, kind: input, shape index: {}]
  %s1 = inlined_call_operand.vmem [shape: bf16[8,4], index: 1, kind: input, shape index: {}]
  %s2 = inlined_call_operand.vmem [shape: f32[8,1], index: 2, kind: input, shape index: {}]
  %s3 = inlined_call_operand.vmem [shape: f32[8,1], index: 3, kind: input, shape index: {}]
  %s4 = inlined_call_operand.hbm [shape: f32[2,8,16], index: 4, kind: output, shape index: {}]
  %s5 = sld [smem:[#allocation0]]
  $region49: #{conv1_1_block.3} parent=0
    _
  %s7 = ssub.s32 1, %s5
  %s8 = scalar_select 0, %s7, %s5
  $region1: #{conv1_1_block.3} parent=0
    #allocation2 [shape = 'u8[8192]{0}', space=vmem, size = 0x2000, scoped, tag = 'output window, operand 0']
    #allocation3 [shape = 's32[2]{0}', space=sflag, size = 0x8, scoped, tag = 'scoped memory for conv1_1_block.3']
    %9 = vsyncpa [#allocation3], 0
    %s10 = scalar_lea.sflag [#allocation3], 1
    %11 = vsyncpa %s10, 0
    loop: start=0, step=1, limit=4
    $region2: #{conv1_1_block.3} parent=1 // loop_pre_header
      _
    $region3: #{conv1_1_block.3} parent=1 // loop_header
      %s13 = sphi 0, %s17
      %p14 = scmp.ge.s32.totalorder %s13, 4
      %s20 = sphi 0, %s32
      %s21 = sphi 0, %s28
      %s22 = sphi 0, %s20
      %s23 = sphi 0, %s21
      %s24 = sphi 0, %s22
      %s25 = sphi 0, %s23
      %s37 = sphi 0, %s39
      %s40 = sphi 0, %s37
      %s41 = sphi 0, %s40
      %s57 = sphi 0, %s41
      %s61 = sphi 0, %s61
      %s63 = sphi 0, %s61
      %s64 = sphi 0, %s63
      %s78 = sphi 0, %s64
      %s82 = sphi 0, %s82
      %s84 = sphi 0, %s82
      %s85 = sphi 0, %s84
      %s99 = sphi 0, %s85
      %s103 = sphi 0, %s103
      %s105 = sphi 0, %s103
      %s106 = sphi 0, %s105
      %s120 = sphi 0, %s106
      %s128 = sphi 0, %s130
      %s131 = sphi 0, %s128
      %s132 = sphi 0, %s131
      %s148 = sphi 0, %s132
    $region4: #{conv1_1_block.3} parent=1 // loop_header_branch
      %16 = sbr.rel (%p14) target = $region8
    $region5: #{conv1_1_block.3} parent=1 // loop_body
      %s18 = ssub.s32 %s13, 1
      %s19 = ssub.s32 %s13, 2
      %s26 = sadd.s32 1, %s21
      %p27 = scmp.ge.s32.totalorder %s26, 1
      %s28 = scalar_select %p27, 0, %s26
      %s29 = sadd.s32 1, %s20
      %s30 = scalar_select %p27, %s29, %s20
      %p31 = scmp.ge.s32.totalorder %s30, 2
      %s32 = scalar_select %p31, 0, %s30
      %s33 = ssub.s32 %s20, %s32
      %s34 = ssub.s32 %s21, %s28
      %s35 = sor.u32 %s33, %s34
      %p36 = scmp.eq.s32.totalorder %s35, 0
      %s38 = sadd.s32 %s37, 1
      %s39 = scalar_select %p36, %s37, %s38
      %p42 = pneg %p36
      %p43 = scmp.eq.s32.totalorder %s13, 1
      %p44 = por %p42, %p43
      %p45 = scmp.ne.s32.totalorder %s37, %s40
      %p46 = scmp.eq.s32.totalorder %s13, 0
      %p47 = por %p45, %p46
      %p48 = scmp.ne.s32.totalorder %s37, %s40
      %p49 = scmp.eq.s32.totalorder %s18, 1
      %p50 = por %p48, %p49
      %p51 = scmp.ne.s32.totalorder %s40, %s41
      %p52 = scmp.eq.s32.totalorder %s18, 0
      %p53 = por %p51, %p52
      %p54 = scmp.ne.s32.totalorder %s40, %s41
      %p55 = scmp.eq.s32.totalorder %s19, 1
      %p56 = por %p54, %p55
      %p58 = scmp.ne.s32.totalorder %s41, %s57
      %p59 = scmp.eq.s32.totalorder %s19, 0
      %p60 = por %p58, %p59
      %s62 = sadd.s32 %s61, 1
      %p65 = scmp.eq.s32.totalorder %s13, 1
      %p66 = scmp.ne.s32.totalorder %s61, %s63
      %p67 = scmp.eq.s32.totalorder %s13, 0
      %p68 = por %p66, %p67
      %p69 = scmp.ne.s32.totalorder %s61, %s63
      %p70 = scmp.eq.s32.totalorder %s18, 1
      %p71 = por %p69, %p70
      %p72 = scmp.ne.s32.totalorder %s63, %s64
      %p73 = scmp.eq.s32.totalorder %s18, 0
      %p74 = por %p72, %p73
      %p75 = scmp.ne.s32.totalorder %s63, %s64
      %p76 = scmp.eq.s32.totalorder %s19, 1
      %p77 = por %p75, %p76
      %p79 = scmp.ne.s32.totalorder %s64, %s78
      %p80 = scmp.eq.s32.totalorder %s19, 0
      %p81 = por %p79, %p80
      %s83 = sadd.s32 %s82, 1
      %p86 = scmp.eq.s32.totalorder %s13, 1
      %p87 = scmp.ne.s32.totalorder %s82, %s84
      %p88 = scmp.eq.s32.totalorder %s13, 0
      %p89 = por %p87, %p88
      %p90 = scmp.ne.s32.totalorder %s82, %s84
      %p91 = scmp.eq.s32.totalorder %s18, 1
      %p92 = por %p90, %p91
      %p93 = scmp.ne.s32.totalorder %s84, %s85
      %p94 = scmp.eq.s32.totalorder %s18, 0
      %p95 = por %p93, %p94
      %p96 = scmp.ne.s32.totalorder %s84, %s85
      %p97 = scmp.eq.s32.totalorder %s19, 1
      %p98 = por %p96, %p97
      %p100 = scmp.ne.s32.totalorder %s85, %s99
      %p101 = scmp.eq.s32.totalorder %s19, 0
      %p102 = por %p100, %p101
      %s104 = sadd.s32 %s103, 1
      %p107 = scmp.eq.s32.totalorder %s13, 1
      %p108 = scmp.ne.s32.totalorder %s103, %s105
      %p109 = scmp.eq.s32.totalorder %s13, 0
      %p110 = por %p108, %p109
      %p111 = scmp.ne.s32.totalorder %s103, %s105
      %p112 = scmp.eq.s32.totalorder %s18, 1
      %p113 = por %p111, %p112
      %p114 = scmp.ne.s32.totalorder %s105, %s106
      %p115 = scmp.eq.s32.totalorder %s18, 0
      %p116 = por %p114, %p115
      %p117 = scmp.ne.s32.totalorder %s105, %s106
      %p118 = scmp.eq.s32.totalorder %s19, 1
      %p119 = por %p117, %p118
      %p121 = scmp.ne.s32.totalorder %s106, %s120
      %p122 = scmp.eq.s32.totalorder %s19, 0
      %p123 = por %p121, %p122
      %s124 = ssub.s32 %s20, %s32
      %s125 = ssub.s32 %s21, %s28
      %s126 = sor.u32 %s124, %s125
      %p127 = scmp.eq.s32.totalorder %s126, 0
      %s129 = sadd.s32 %s128, 1
      %s130 = scalar_select %p127, %s128, %s129
      %p133 = pneg %p127
      %p134 = scmp.eq.s32.totalorder %s13, 1
      %p135 = por %p133, %p134
      %p136 = scmp.ne.s32.totalorder %s128, %s131
      %p137 = scmp.eq.s32.totalorder %s13, 0
      %p138 = por %p136, %p137
      %p139 = scmp.ne.s32.totalorder %s128, %s131
      %p140 = scmp.eq.s32.totalorder %s18, 1
      %p141 = por %p139, %p140
      %p142 = scmp.ne.s32.totalorder %s131, %s132
      %p143 = scmp.eq.s32.totalorder %s18, 0
      %p144 = por %p142, %p143
      %p145 = scmp.ne.s32.totalorder %s131, %s132
      %p146 = scmp.eq.s32.totalorder %s19, 1
      %p147 = por %p145, %p146
      %p149 = scmp.ne.s32.totalorder %s132, %s148
      %p150 = scmp.eq.s32.totalorder %s19, 0
      %p151 = por %p149, %p150
      %p152 = scmp.le.s32.totalorder 1, %s13
      %p153 = scmp.lt.s32.totalorder %s13, 3
      %p154 = pnand %p152, %p153
      %p155 = pneg %p154
      // Predicated region
      $region9: #{conv1_1_block.3} parent=5 // pred_check
        _
      $region10: #{conv1_1_block.3} parent=5 // pred_check_branch
        %157 = sbr.rel (%p154) target = $region12
      $region11: #{conv1_1_block.3} parent=5 // pred_region
        %s158 = ssub.s32 %s13, 1
        // Predicated region
        $region13: #{conv1_1_block.3} parent=11 // pred_check
          %p159 = pneg %p74
        $region14: #{conv1_1_block.3} parent=11 // pred_check_branch
          %161 = sbr.rel (%p159) target = $region16
        $region15: #{conv1_1_block.3} parent=11 // pred_region
          _
        $region16: #{conv1_1_block.3} parent=11 // pred_fallthru
          _
        // Predicated region
        $region17: #{conv1_1_block.3} parent=11 // pred_check
          %p162 = pneg %p95
        $region18: #{conv1_1_block.3} parent=11 // pred_check_branch
          %164 = sbr.rel (%p162) target = $region20
        $region19: #{conv1_1_block.3} parent=11 // pred_region
          _
        $region20: #{conv1_1_block.3} parent=11 // pred_fallthru
          _
        // Predicated region
        $region21: #{conv1_1_block.3} parent=11 // pred_check
          %p165 = pneg %p116
        $region22: #{conv1_1_block.3} parent=11 // pred_check_branch
          %167 = sbr.rel (%p165) target = $region24
        $region23: #{conv1_1_block.3} parent=11 // pred_region
          _
        $region24: #{conv1_1_block.3} parent=11 // pred_fallthru
          _
      $region12: #{conv1_1_block.3} parent=5 // pred_fallthru
        _
      %p168 = scmp.lt.s32.totalorder %s13, 2
      // Predicated region
      $region25: #{conv1_1_block.3} parent=5 // pred_check
        %p169 = pneg %p168
      $region26: #{conv1_1_block.3} parent=5 // pred_check_branch
        %171 = sbr.rel (%p169) target = $region28
      $region27: #{conv1_1_block.3} parent=5 // pred_region
        // Predicated region
        $region29: #{conv1_1_block.3} parent=27 // pred_check
          %p172 = pneg %p47
        $region30: #{conv1_1_block.3} parent=27 // pred_check_branch
          %174 = sbr.rel (%p172) target = $region32
        $region31: #{conv1_1_block.3} parent=27 // pred_region
          %p175 = scmp.lt.s32.totalorder %s20, 1
          %s176 = scalar_select %p175, %s20, 1
          %p177 = scmp.lt.s32.totalorder %s21, 0
          %s178 = scalar_select %p177, %s21, 0
          %s179 = sadd.s32 %s178, %s176
          %s180 = smul.addr %s179, 2
          %s181 = scalar_lea.vmem %s0, %s180
        $region32: #{conv1_1_block.3} parent=27 // pred_fallthru
          _
      $region28: #{conv1_1_block.3} parent=5 // pred_fallthru
        _
      %p182 = scmp.le.s32.totalorder 1, %s13
      %p183 = scmp.lt.s32.totalorder %s13, 3
      %p184 = pnand %p182, %p183
      %p185 = pneg %p184
      // Predicated region
      $region33: #{conv1_1_block.3} parent=5 // pred_check
        _
      $region34: #{conv1_1_block.3} parent=5 // pred_check_branch
        %187 = sbr.rel (%p184) target = $region36
      $region35: #{conv1_1_block.3} parent=5 // pred_region
        %s188 = ssub.s32 %s13, 1
        %p189 = scmp.lt.s32.totalorder %s22, 1
        %s190 = scalar_select %p189, %s22, 1
        %p191 = scmp.lt.s32.totalorder %s23, 0
        %s192 = scalar_select %p191, %s23, 0
        %s193 = sadd.s32 %s192, %s190
        %s194 = smul.addr %s193, 2
        %s195 = scalar_lea.vmem %s0, %s194
        %p196 = pneg %p53
        %p197 = pneg %p50
        %p198 = pneg %p74
        %p199 = pneg %p71
        %p200 = pneg %p95
        %p201 = pneg %p92
        %p202 = pneg %p116
        %p203 = pneg %p113
        %p204 = pneg %p144
        %p205 = pneg %p141
        %s206 = sand.u32 %s131, 1
        %s207 = scalar_lea.sflag [#allocation3], %s206
        %s208 = sand.u32 %s131, 1
        %s209 = smul.addr %s208, 8
        %s210 = scalar_lea.vmem [#allocation2], %s209
        %p211 = scmp.lt.s32.totalorder %s22, 1
        %s212 = scalar_select %p211, %s22, 1
        %p213 = scmp.lt.s32.totalorder %s23, 0
        %s214 = scalar_select %p213, %s23, 0
        %s215 = sadd.s32 %s214, %s212
        %s216 = smul.addr %s215, 2
        %s217 = scalar_lea.vmem %s0, %s216
        %v219 = vld [vmem:[%s1] sm:$0xf]
        %v220 = vld [vmem:[%s217] sm:$0x3]
        %vm221 = vcmask 31744
        %v223 = vsel %vm221, %v219, 0
        %vm225 = vcmask 1041408
        %v227 = vsel %vm225, %v220, 0
        %229 = vmatpush.bf16.msra.mxu0 0
        %230 = vmatpush.bf16.msra.mxu0 0
        %231 = vmatpush.bf16.msra.mxu0 0
        %232 = vmatpush.bf16.msra.mxu0 0
        %233 = vmatpush.bf16.msra.mxu0 0
        %234 = vmatpush.bf16.msra.mxu0 0
        %235 = vmatpush.bf16.msra.mxu0 0
        %236 = vmatpush.bf16.msra.mxu0 %v227
        %237 = vmatmul.bf16.gmra.mxu0 %v223
        %v238 = vpop.f32.mrf.mxu0
        %v239 = vadd.f32 0.0, %v238
        %v240 = vpop.f32.mrf.mxu0
        %241 = vdwg.mxu0
        %v242 = vld [vmem:[%s2] sm:$0xff]
        %244 = vset.pattern.permute.xlu0 0
        %245 = vperm.xlu0 %244, %v242
        %v246 = vpop.permute.xlu0 %245
        %v248 = vmul.f32 %v239, %v246
        %v249 = vld [vmem:[%s3] sm:$0xff]
        %251 = vset.pattern.permute.xlu0 0
        %252 = vperm.xlu0 %251, %v249
        %v253 = vpop.permute.xlu0 %252
        %v255 = vadd.f32 %v248, %v253
        %v256 = vmax.f32 %v255, 0.0
        %v257 = vmin.f32 %v256, 6.0
        %vm258 = vcmask 130048
        %259 = vst.msk [vmem:[%s210] sm:$0xff] %vm258, %v257
        %s260 = sand.u32 %s131, 1
        %s261 = scalar_lea.sflag [#allocation3], %s260
        %s262 = sand.u32 %s131, 1
        %s263 = smul.addr %s262, 8
        %s264 = scalar_lea.vmem [#allocation2], %s263
        // Predicated region
        $region37: #{conv1_1_block.3} parent=35 // pred_check
          %p265 = pneg %p141
        $region38: #{conv1_1_block.3} parent=35 // pred_check_branch
          %267 = sbr.rel (%p265) target = $region40
        $region39: #{conv1_1_block.3} parent=35 // pred_region
          %269 = vsyncadd %s261, 0
          %s270 = sadd.s32 %s23, %s22
          %s271 = smul.addr %s270, 8
          %s272 = scalar_lea.hbm %s4, %s271
          %s274 = sshll.u32 %s264, 4
          %s275 = int_to_ptr.vmem [resolvable:$true] %s274
          %s276 = sshll.u32 %s272, 4
          %s277 = int_to_ptr.hbm [resolvable:$true] %s276
          %279 = dma.vmem_to_hbm [thread:$0]  %s275, 128, %s277, %s261
        $region40: #{conv1_1_block.3} parent=35 // pred_fallthru
          _
      $region36: #{conv1_1_block.3} parent=5 // pred_fallthru
        _
      %p280 = scmp.le.s32.totalorder 2, %s13
      // Predicated region
      $region41: #{conv1_1_block.3} parent=5 // pred_check
        %p281 = pneg %p280
      $region42: #{conv1_1_block.3} parent=5 // pred_check_branch
        %283 = sbr.rel (%p281) target = $region44
      $region43: #{conv1_1_block.3} parent=5 // pred_region
        %s284 = ssub.s32 %s13, 2
        // Predicated region
        $region45: #{conv1_1_block.3} parent=43 // pred_check
          %p285 = pneg %p147
        $region46: #{conv1_1_block.3} parent=43 // pred_check_branch
          %287 = sbr.rel (%p285) target = $region48
        $region47: #{conv1_1_block.3} parent=43 // pred_region
          %s288 = sand.u32 %s132, 1
          %s289 = scalar_lea.sflag [#allocation3], %s288
          %s290 = sand.u32 %s132, 1
          %s291 = smul.addr %s290, 8
          %s292 = scalar_lea.vmem [#allocation2], %s291
          %294 = dma.done %s289, 128
        $region48: #{conv1_1_block.3} parent=43 // pred_fallthru
          _
      $region44: #{conv1_1_block.3} parent=5 // pred_fallthru
        _
    $region6: #{conv1_1_block.3} parent=1 // loop_footer
      %s17 = sadd.s32 1, %s13
    $region7: #{conv1_1_block.3} parent=1 // loop_footer_branch
      %12 = sbr.rel target = $region3
    $region8: #{conv1_1_block.3} parent=1 // loop_exit
      _
    %295 = vsyncpa [#allocation3], 1
    %s296 = scalar_lea.sflag [#allocation3], 1
    %297 = vsyncpa %s296, 1

</llo_original>
